<compile_context>
chip_gen: v7x
topology: tpu7x:2x2x1
jax: 0.10.0
libtpu: 0.0.40
codegen_flags: <defaults>
</compile_context>

<pallas_src>
import jax
import jax.numpy as jnp
from jax.experimental import pallas as pl
from jax.experimental.pallas import tpu as pltpu


_MAX_TILE_M = 512  # rows per grid step once M is large (>=~85% of HBM roofline)


def _round_up(v, m):
    return ((v + m - 1) // m) * m


def _make_fused_mlp_kernel(modes):
    """Builds the fused MLP kernel body.

    modes: static tuple of per-layer compute modes:
      "bcast"  -> K == 1: acc = x * w + b           (w is (1, N); VPU outer product)
      "reduce" -> N == 1: acc = sum(x * w, -1) + b  (w pre-transposed to (1, K))
      "dot"    -> general: acc = x @ w + b          (MXU)
    Kernel args: x_ref, w0, b0, w1, b1, ..., o_ref.
    """
    def kernel(x_ref, *refs):
        o_ref = refs[-1]
        wb = refs[:-1]
        h = x_ref[...]
        for li, mode in enumerate(modes):
            w = wb[2 * li][...]
            b = wb[2 * li + 1][...]                                # (1, N)
            if mode == "bcast":
                acc = h * w + b                                    # (tm,1)*(1,N) VPU
            elif mode == "reduce":
                acc = jnp.sum(h * w, axis=-1, keepdims=True) + b   # VPU + XLU reduce
            else:
                acc = jnp.dot(h, w, preferred_element_type=jnp.float32) + b
            h = jax.nn.sigmoid(acc)                                # EUP
        o_ref[...] = h.astype(o_ref.dtype)

    return kernel


@jax.jit
def forecaster_simple_forward(params, input_seq):
    """input_seq: (seq, batch, input_size) -> flattened output in PyTorch order."""
    S, B, F = input_seq.shape
    M = S * B
    x = input_seq.reshape(M, F).astype(jnp.float32)   # native seq-major layout

    # Arrange weights/biases in the orientation the fused kernel wants
    # (decisions are static: they only depend on trace-time shapes).
    modes = []
    flat_wb = []
    n_out = F
    for (w, b) in params:              # w: (K, N)  (PyTorch weight transposed)
        K, N = w.shape
        if K == 1:
            modes.append("bcast")
            wk = w                      # (1, N)
        elif N == 1:
            modes.append("reduce")
            wk = w.T                    # (1, K) lane-dense for the reduction
        else:
            modes.append("dot")
            wk = w                      # (K, N)
        flat_wb += [wk.astype(jnp.float32), b.reshape(1, N).astype(jnp.float32)]
        n_out = N
    modes = tuple(modes)

    # Row tiling: single full-array tile when small, 512-row tiles otherwise.
    if M <= _MAX_TILE_M:
        tile_m, Mp = M, M
    else:
        tile_m = _MAX_TILE_M
        Mp = _round_up(M, tile_m)
        x = jnp.pad(x, ((0, Mp - M), (0, 0)))

    wb_specs = [pl.BlockSpec(a.shape, lambda i: (0, 0)) for a in flat_wb]

    y = pl.pallas_call(
        _make_fused_mlp_kernel(modes),
        out_shape=jax.ShapeDtypeStruct((Mp, n_out), jnp.float32),
        grid=(Mp // tile_m,),
        in_specs=[pl.BlockSpec((tile_m, F), lambda i: (i, 0))] + wb_specs,
        out_specs=pl.BlockSpec((tile_m, n_out), lambda i: (i, 0)),
        compiler_params=pltpu.CompilerParams(
            dimension_semantics=("parallel",)),   # free 2x on v7x's 2 TCs
    )(x, *flat_wb)

    # Reorder seq-major rows to PyTorch's batch-major view(-1) on the tiny output.
    return y[:M].reshape(S, B, n_out).transpose(1, 0, 2).reshape(-1)


def init_params(key, input_size=1, layers=(100,)):
    """Deterministic parameter init matching the module's layer shapes.

    Weights of all but the last layer: normal(std=0.02) as in the module.
    Last layer + biases: small uniform (PyTorch default-style), deterministic.
    Weights are stored already transposed to (in, out) for the kernel.
    """
    params = []
    dims = [input_size] + list(layers) + [1]
    for li in range(len(dims) - 1):
        fan_in, fan_out = dims[li], dims[li + 1]
        key, kw, kb = jax.random.split(key, 3)
        if li < len(dims) - 2:
            w = 0.02 * jax.random.normal(kw, (fan_in, fan_out), jnp.float32)
        else:
            bound = 1.0 / jnp.sqrt(fan_in)
            w = jax.random.uniform(kw, (fan_in, fan_out), jnp.float32,
                                   -bound, bound)
        bound = 1.0 / jnp.sqrt(fan_in)
        b = jax.random.uniform(kb, (fan_out,), jnp.float32, -bound, bound)
        params.append((w, b))
    return params


def _reference_forward(params, input_seq):
    out = jnp.swapaxes(input_seq, 0, 1)            # (batch, seq, input_size)
    for (w, b) in params:
        out = jax.nn.sigmoid(out @ w + b)
    return out.reshape(-1)


if __name__ == "__main__":
    key = jax.random.PRNGKey(0)
    k_in, k_params = jax.random.split(key)

    seq, batch, input_size = 8, 2, 1
    layers = (100,)                                # module default: layers=[100]
    input_seq = jax.random.normal(k_in, (seq, batch, input_size), jnp.float32)

    params = init_params(k_params, input_size=input_size, layers=layers)

    out = forecaster_simple_forward(params, input_seq)
    out = jax.block_until_ready(out)

    ref = _reference_forward(params, input_seq)
    assert out.shape == (seq * batch,), out.shape
    assert jnp.allclose(out, ref, atol=1e-5, rtol=1e-5), "mismatch vs reference"

    print("KERNEL_OK")
</pallas_src>

<mosaic_0001>
module attributes {stable_mosaic.version = 11 : i64} {
  func.func @kernel(%arg0: i32, %arg1: memref<16x1xf32, #tpu.memory_space<vmem>>, %arg2: memref<1x100xf32, #tpu.memory_space<vmem>>, %arg3: memref<1x100xf32, #tpu.memory_space<vmem>>, %arg4: memref<1x100xf32, #tpu.memory_space<vmem>>, %arg5: memref<1x1xf32, #tpu.memory_space<vmem>>, %arg6: memref<16x1xf32, #tpu.memory_space<vmem>>) attributes {dimension_semantics = [#tpu.dimension_semantics<parallel>], iteration_bounds = array<i64: 1>, scalar_prefetch = 0 : i64, scratch_operands = 0 : i64, tpu.core_type = #tpu.core_type<tc>, window_params = [{transform_indices = @transform_0, window_bounds = array<i64: 16, 1>}, {pipeline_mode = #tpu.pipeline_mode<synchronous>, transform_indices = @transform_1, window_bounds = array<i64: 1, 100>}, {pipeline_mode = #tpu.pipeline_mode<synchronous>, transform_indices = @transform_2, window_bounds = array<i64: 1, 100>}, {pipeline_mode = #tpu.pipeline_mode<synchronous>, transform_indices = @transform_3, window_bounds = array<i64: 1, 100>}, {pipeline_mode = #tpu.pipeline_mode<synchronous>, transform_indices = @transform_4, window_bounds = array<i64: 1, 1>}, {transform_indices = @transform_5, window_bounds = array<i64: 16, 1>}]} {
    %c0 = arith.constant 0 : index
    %c0_0 = arith.constant 0 : index
    %0 = vector.load %arg1[%c0, %c0_0] : memref<16x1xf32, #tpu.memory_space<vmem>>, vector<16x1xf32>
    %c0_1 = arith.constant 0 : index
    %c0_2 = arith.constant 0 : index
    %1 = vector.load %arg2[%c0_1, %c0_2] : memref<1x100xf32, #tpu.memory_space<vmem>>, vector<1x100xf32>
    %c0_3 = arith.constant 0 : index
    %c0_4 = arith.constant 0 : index
    %2 = vector.load %arg3[%c0_3, %c0_4] : memref<1x100xf32, #tpu.memory_space<vmem>>, vector<1x100xf32>
    %3 = vector.broadcast %0 : vector<16x1xf32> to vector<16x100xf32>
    %4 = vector.broadcast %1 : vector<1x100xf32> to vector<16x100xf32>
    %5 = arith.mulf %3, %4 : vector<16x100xf32>
    %6 = vector.broadcast %2 : vector<1x100xf32> to vector<16x100xf32>
    %7 = arith.addf %5, %6 : vector<16x100xf32>
    %8 = arith.negf %7 : vector<16x100xf32>
    %9 = math.exp %8 : vector<16x100xf32>
    %cst = arith.constant 1.000000e+00 : f32
    %10 = vector.broadcast %cst : f32 to vector<16x100xf32>
    %11 = arith.addf %10, %9 : vector<16x100xf32>
    %12 = arith.divf %10, %11 : vector<16x100xf32>
    %c0_5 = arith.constant 0 : index
    %c0_6 = arith.constant 0 : index
    %13 = vector.load %arg4[%c0_5, %c0_6] : memref<1x100xf32, #tpu.memory_space<vmem>>, vector<1x100xf32>
    %c0_7 = arith.constant 0 : index
    %c0_8 = arith.constant 0 : index
    %14 = vector.load %arg5[%c0_7, %c0_8] : memref<1x1xf32, #tpu.memory_space<vmem>>, vector<1x1xf32>
    %15 = vector.broadcast %13 : vector<1x100xf32> to vector<16x100xf32>
    %16 = arith.mulf %12, %15 : vector<16x100xf32>
    %cst_9 = arith.constant dense<0.000000e+00> : vector<16xf32>
    %17 = vector.multi_reduction <add>, %16, %cst_9 [1] : vector<16x100xf32> to vector<16xf32>
    %18 = vector.shape_cast %17 : vector<16xf32> to vector<16x1xf32>
    %19 = vector.broadcast %14 : vector<1x1xf32> to vector<16x1xf32>
    %20 = arith.addf %18, %19 : vector<16x1xf32>
    %21 = arith.negf %20 : vector<16x1xf32>
    %22 = math.exp %21 : vector<16x1xf32>
    %cst_10 = arith.constant 1.000000e+00 : f32
    %23 = vector.broadcast %cst_10 : f32 to vector<16x1xf32>
    %24 = arith.addf %23, %22 : vector<16x1xf32>
    %25 = arith.divf %23, %24 : vector<16x1xf32>
    %c0_11 = arith.constant 0 : index
    %c0_12 = arith.constant 0 : index
    %26 = vector.load %arg6[%c0_11, %c0_12] : memref<16x1xf32, #tpu.memory_space<vmem>>, vector<16x1xf32>
    tpu.vector_store %arg6[%c0_11, %c0_12], %25 {strides = array<i32>} : memref<16x1xf32, #tpu.memory_space<vmem>>, vector<16x1xf32>,
    return
  }
  func.func @transform_0(%arg0: i32) -> (i32, i32) {
    %c0_i32 = arith.constant 0 : i32
    %c0_i32_0 = arith.constant 0 : i32
    return %arg0, %c0_i32 : i32, i32
  }
  func.func @transform_1(%arg0: i32) -> (i32, i32) {
    %c0_i32 = arith.constant 0 : i32
    %c0_i32_0 = arith.constant 0 : i32
    %c0_i32_1 = arith.constant 0 : i32
    return %c0_i32, %c0_i32_0 : i32, i32
  }
  func.func @transform_2(%arg0: i32) -> (i32, i32) {
    %c0_i32 = arith.constant 0 : i32
    %c0_i32_0 = arith.constant 0 : i32
    %c0_i32_1 = arith.constant 0 : i32
    return %c0_i32, %c0_i32_0 : i32, i32
  }
  func.func @transform_3(%arg0: i32) -> (i32, i32) {
    %c0_i32 = arith.constant 0 : i32
    %c0_i32_0 = arith.constant 0 : i32
    %c0_i32_1 = arith.constant 0 : i32
    return %c0_i32, %c0_i32_0 : i32, i32
  }
  func.func @transform_4(%arg0: i32) -> (i32, i32) {
    %c0_i32 = arith.constant 0 : i32
    %c0_i32_0 = arith.constant 0 : i32
    %c0_i32_1 = arith.constant 0 : i32
    return %c0_i32, %c0_i32_0 : i32, i32
  }
  func.func @transform_5(%arg0: i32) -> (i32, i32) {
    %c0_i32 = arith.constant 0 : i32
    %c0_i32_0 = arith.constant 0 : i32
    return %arg0, %c0_i32 : i32, i32
  }
}

</mosaic_0001>

<llo_original>
// kernel: forecaster_simple_forward.1
$region0: #{forecaster_simple_forward.1}
  #allocation0 [shape = 'u32[]', space=smem, size = 0x4, offset = 0x4, fixed_abs, tag = 'smem constant byte address 0x4 - core index']
  #allocation1 [shape = 'u32[144,128]{1,0:T(1,128)}', space=vmem, size = 0x12000, scoped, tag = 'internal scratch']
  #allocation2 [shape = 'f32[1,1]{1,0:T(1,128)S(1)}', space=vmem, size = 0x200, scoped, tag = 'scoped memory for forecaster_simple_forward.1']
  %s0 = inlined_call_operand.vmem [shape: f32[16,1], index: 0, kind: input, shape index: {}]
  %s1 = inlined_call_operand.vmem [shape: f32[1,100], index: 1, kind: input, shape index: {}]
  %s2 = inlined_call_operand.vmem [shape: f32[1,100], index: 2, kind: input, shape index: {}]
  %s3 = inlined_call_operand.vmem [shape: f32[1,100], index: 3, kind: input, shape index: {}]
  %s4 = inlined_call_operand.<no memory space> [shape: f32[1,1], index: 4, kind: input, shape index: {}]
  %s5 = inlined_call_operand.vmem [shape: f32[16,1], index: 5, kind: output, shape index: {}]
  %s6 = sld [smem:[#allocation0]]
  $region30: #{forecaster_simple_forward.1} parent=0
    _
  %s8 = ssub.s32 1, %s6
  %s9 = scalar_select 0, %s8, %s6
  %v10 = vstv %s4
  %11 = vst [vmem:[#allocation2] sm:$0x1] %v10
  // Predicated region
  $region2: #{forecaster_simple_forward.1} parent=0 // pred_check
    _
  $region3: #{forecaster_simple_forward.1} parent=0 // pred_check_branch
    %13 = sbr.rel (0) target = $region5
  $region4: #{forecaster_simple_forward.1} parent=0 // pred_region
    _
  $region5: #{forecaster_simple_forward.1} parent=0 // pred_fallthru
    _
  // Predicated region
  $region6: #{forecaster_simple_forward.1} parent=0 // pred_check
    _
  $region7: #{forecaster_simple_forward.1} parent=0 // pred_check_branch
    %15 = sbr.rel (0) target = $region9
  $region8: #{forecaster_simple_forward.1} parent=0 // pred_region
    _
  $region9: #{forecaster_simple_forward.1} parent=0 // pred_fallthru
    _
  // Predicated region
  $region10: #{forecaster_simple_forward.1} parent=0 // pred_check
    _
  $region11: #{forecaster_simple_forward.1} parent=0 // pred_check_branch
    %17 = sbr.rel (0) target = $region13
  $region12: #{forecaster_simple_forward.1} parent=0 // pred_region
    _
  $region13: #{forecaster_simple_forward.1} parent=0 // pred_fallthru
    _
  // Predicated region
  $region14: #{forecaster_simple_forward.1} parent=0 // pred_check
    _
  $region15: #{forecaster_simple_forward.1} parent=0 // pred_check_branch
    %19 = sbr.rel (0) target = $region17
  $region16: #{forecaster_simple_forward.1} parent=0 // pred_region
    _
  $region17: #{forecaster_simple_forward.1} parent=0 // pred_fallthru
    _
  // Predicated region
  $region18: #{forecaster_simple_forward.1} parent=0 // pred_check
    _
  $region19: #{forecaster_simple_forward.1} parent=0 // pred_check_branch
    %21 = sbr.rel (0) target = $region21
  $region20: #{forecaster_simple_forward.1} parent=0 // pred_region
    _
  $region21: #{forecaster_simple_forward.1} parent=0 // pred_fallthru
    _
  %v22 = vld [vmem:[%s0] sm:$0xff]
  %v23 = vld [vmem:[%s0 + $0x8] sm:$0xff]
  %v24 = vld [vmem:[%s1] sm:$0x1]
  %v25 = vld [vmem:[%s2] sm:$0x1]
  %27 = vset.pattern.permute.xlu0 0
  %28 = vperm.xlu0 %27, %v22
  %v29 = vpop.permute.xlu0 %28
  %32 = vset.pattern.permute.xlu0 0
  %33 = vperm.xlu0 %32, %v23
  %v34 = vpop.permute.xlu0 %33
  %v37 = vlaneseq
  %v38 = vshrl.u32 %v37, 7
  %v39 = vsub.s32 0, %v38
  %v40 = vrot.slane %v24, %v39
  %v42 = vmul.f32 %v29, %v40
  %v43 = vmul.f32 %v34, %v40
  %v45 = vlaneseq
  %v46 = vshrl.u32 %v45, 7
  %v47 = vsub.s32 0, %v46
  %v48 = vrot.slane %v25, %v47
  %v50 = vadd.f32 %v42, %v48
  %v51 = vadd.f32 %v43, %v48
  %v52 = vxor.u32 %v50, 2147483648
  %v53 = vxor.u32 %v51, 2147483648
  %v54 = vmul.f32 %v52, 1.442695
  %v55 = vpow.pop %v54
  %v56 = vmul.f32 %v53, 1.442695
  %v57 = vpow.pop %v56
  %v58 = vadd.f32 %v55, 1.0
  %v59 = vadd.f32 %v57, 1.0
  %v60 = vrcp.pop %v58
  %v61 = vmul.f32 1.0, %v60
  %v62 = vrcp.pop %v59
  %v63 = vmul.f32 1.0, %v62
  %v64 = vld [vmem:[%s3] sm:$0x1]
  %v65 = vld [vmem:[#allocation2] sm:$0x1]
  %v67 = vlaneseq
  %v68 = vshrl.u32 %v67, 7
  %v69 = vsub.s32 0, %v68
  %v70 = vrot.slane %v64, %v69
  %v72 = vmul.f32 %v61, %v70
  %v73 = vmul.f32 %v63, %v70
  %vm74 = vcmask 818176
  %v75 = vsel %vm74, %v72, 0.0
  %76 = vadd.xlane.f32.xlu0 %v75
  %v77 = vpop.xlane.xlu0 %76
  %v78 = vsel %vm74, %v73, 0.0
  %79 = vadd.xlane.f32.xlu0 %v78
  %v80 = vpop.xlane.xlu0 %79
  %v82 = vlaneseq
  %v83 = vshrl.u32 %v82, 7
  %v84 = vsub.s32 0, %v83
  %v85 = vrot.slane %v65, %v84
  %v87 = vadd.f32 %v77, %v85
  %v88 = vadd.f32 %v80, %v85
  %v89 = vxor.u32 %v87, 2147483648
  %v90 = vxor.u32 %v88, 2147483648
  %v91 = vmul.f32 %v89, 1.442695
  %v92 = vpow.pop %v91
  %v93 = vmul.f32 %v90, 1.442695
  %v94 = vpow.pop %v93
  %v95 = vadd.f32 %v92, 1.0
  %v96 = vadd.f32 %v94, 1.0
  %v97 = vrcp.pop %v95
  %v98 = vmul.f32 1.0, %v97
  %v99 = vrcp.pop %v96
  %v100 = vmul.f32 1.0, %v99
  %vm101 = vcmask 7168
  %102 = vst.msk [vmem:[%s5] sm:$0xff] %vm101, %v98
  %103 = vst.msk [vmem:[%s5 + $0x8] sm:$0xff] %vm101, %v100
  // Predicated region
  $region22: #{forecaster_simple_forward.1} parent=0 // pred_check
    _
  $region23: #{forecaster_simple_forward.1} parent=0 // pred_check_branch
    %105 = sbr.rel (0) target = $region25
  $region24: #{forecaster_simple_forward.1} parent=0 // pred_region
    _
  $region25: #{forecaster_simple_forward.1} parent=0 // pred_fallthru
    _
  // Predicated region
  $region26: #{forecaster_simple_forward.1} parent=0 // pred_check
    _
  $region27: #{forecaster_simple_forward.1} parent=0 // pred_check_branch
    %107 = sbr.rel (0) target = $region29
  $region28: #{forecaster_simple_forward.1} parent=0 // pred_region
    _
  $region29: #{forecaster_simple_forward.1} parent=0 // pred_fallthru
    _

</llo_original>
